<compile_context>
chip_gen: v6e
topology: v6e:2x2x1
jax: 0.10.0
libtpu: 0.0.40
codegen_flags: <defaults>
</compile_context>

<pallas_src>
import functools

import jax
import jax.numpy as jnp
from jax import lax
from jax.experimental import pallas as pl
from jax.experimental.pallas import tpu as pltpu

_LANE = 128
_MAX_COL_TILE = 4096            # max lanes per block along the last dim
_BLOCK_BYTE_BUDGET = 1 << 20    # ~1 MiB per block (x2 in + x2 out double-buffers)


def _round_up(x, m):
    return ((x + m - 1) // m) * m


def _sublane(dtype):
    # sublane packing: 8 for 4-byte, 16 for 2-byte, 32 for 1-byte dtypes
    return max(8, 32 // jnp.dtype(dtype).itemsize)


def _premix_seed(seed):
    """Scramble the user seed on the host (murmur-style finalizer) so different
    (seed, block) pairs give unrelated streams.  Returned as an int32 bit
    pattern for the SMEM prefetch scalar."""
    s = int(seed) & 0xFFFFFFFF
    s = (s * 0x9E3779B9 + 0x7F4A7C15) & 0xFFFFFFFF
    s ^= s >> 16
    s = (s * 0x85EBCA6B) & 0xFFFFFFFF
    s ^= s >> 13
    s = (s * 0xC2B2AE35) & 0xFFFFFFFF
    s ^= s >> 16
    return s - (1 << 32) if s >= (1 << 31) else s


def _mix32(x):
    """Wang-style 32-bit integer scrambler using only add/xor/shift on int32
    (plain VPU ops everywhere; no uint converts, no multiplies, no PRNG state)."""
    x = (x ^ jnp.int32(-1)) + (x << 15)
    x = x ^ (x >> 12)
    x = x + (x << 2)
    x = x ^ (x >> 4)
    x = (x + (x << 3)) + (x << 11)     # x * 2057 via shift-adds
    x = x ^ (x >> 16)
    return x


def _keep_mask(z, threshold):
    # Bernoulli(1 - p): keep iff low 24 hashed bits >= floor(p * 2^24)
    return (_mix32(z) & jnp.int32(0x00FFFFFF)) >= jnp.int32(threshold)


# ------------------------------------------------------------------ kernels --

def _dropout_kernel(seed_ref, x_ref, o_ref, *, threshold, scale, cols_shift):
    # Per-element dropout on a lane-dense 2-D slab of the flattened input.
    rt, ct = x_ref.shape
    i = pl.program_id(0)
    j = pl.program_id(1)
    r = lax.broadcasted_iota(jnp.int32, (rt, ct), 0) + i * rt
    c = lax.broadcasted_iota(jnp.int32, (rt, ct), 1) + j * ct
    # global flattened element index; slab width is a power of two -> shift
    idx = (r << cols_shift) + c
    keep = _keep_mask(idx ^ seed_ref[0], threshold)
    o_ref[...] = jnp.where(keep, x_ref[...] * scale, 0).astype(o_ref.dtype)


def _dropout2d_kernel(seed_ref, x_ref, o_ref, *, threshold, scale):
    # Channel dropout: one draw per row (= one (n, c) channel).  The hash only
    # depends on the global row index, so it is constant along the row and
    # identical across column tiles of the same row.
    rt, ct = x_ref.shape
    i = pl.program_id(0)
    row = lax.broadcasted_iota(jnp.int32, (rt, ct), 0) + i * rt
    keep = _keep_mask(row ^ seed_ref[0], threshold)
    o_ref[...] = jnp.where(keep, x_ref[...] * scale, 0).astype(o_ref.dtype)


# ------------------------------------------------------------------ wrappers --

def _run(kernel, x2, seed):
    orig_rows, orig_cols = x2.shape
    dt = x2.dtype
    itemsize = jnp.dtype(dt).itemsize
    sub = _sublane(dt)

    # lane-dense column tiling (multiple of 128), capped so VMEM stays bounded
    cols_p = _round_up(orig_cols, _LANE)
    if cols_p <= _MAX_COL_TILE:
        col_tile = cols_p
    else:
        col_tile = _MAX_COL_TILE
        cols_p = _round_up(cols_p, col_tile)

    # byte-budgeted row tile, aligned to the dtype's sublane packing
    rt = max(sub, (_BLOCK_BYTE_BUDGET // (col_tile * itemsize)) // sub * sub)
    rows_p = _round_up(orig_rows, sub)
    row_tile = min(rt, rows_p)
    rows_p = _round_up(rows_p, row_tile)

    if (rows_p, cols_p) != (orig_rows, orig_cols):
        x2 = jnp.pad(x2, ((0, rows_p - orig_rows), (0, cols_p - orig_cols)))

    grid = (rows_p // row_tile, cols_p // col_tile)
    seed_arr = jnp.asarray([_premix_seed(seed)], dtype=jnp.int32)

    out = pl.pallas_call(
        kernel,
        out_shape=jax.ShapeDtypeStruct((rows_p, cols_p), dt),
        grid_spec=pltpu.PrefetchScalarGridSpec(
            num_scalar_prefetch=1,
            grid=grid,
            in_specs=[pl.BlockSpec((row_tile, col_tile), lambda i, j, s: (i, j))],
            out_specs=pl.BlockSpec((row_tile, col_tile), lambda i, j, s: (i, j)),
        ),
        compiler_params=pltpu.CompilerParams(
            # blocks are fully independent (stateless hash RNG) -> let v7x
            # shard the grid across both TensorCores
            dimension_semantics=("parallel", "parallel")),
    )(seed_arr, x2)

    if (rows_p, cols_p) != (orig_rows, orig_cols):
        out = out[:orig_rows, :orig_cols]
    return out


def bernoulli_dropout(x, p=0.0, seed=0):
    """Forward pass of BernoulliDropout (always training mode)."""
    p = float(p)
    if p <= 0.0:
        return x                                  # F.dropout*(p=0) is identity
    threshold = min(1 << 24, max(0, int(round(p * (1 << 24)))))
    scale = 0.0 if p >= 1.0 else 1.0 / (1.0 - p)

    if x.ndim > 2:
        # dropout2d: drop whole (sample, channel) slices.  Layout NCHW ->
        # flatten to (N*C, spatial) so "drop a channel" == "drop a row".
        n, c = x.shape[0], x.shape[1]
        spatial = 1
        for d in x.shape[2:]:
            spatial *= int(d)
        x2 = x.reshape(n * c, spatial)
        kern = functools.partial(_dropout2d_kernel, threshold=threshold, scale=scale)
        out2 = _run(kern, x2, seed)
        return out2.reshape(x.shape)
    else:
        # per-element dropout: re-slab the flattened input so the kernel sees a
        # lane-dense (rows, 128*k) block regardless of the original shape
        flat = x.reshape(-1)
        L = int(flat.shape[0])
        sub = _sublane(x.dtype)
        cols = 1024 if L >= 1024 * sub else _LANE
        rows = -(-L // cols)
        pad = rows * cols - L
        if pad:
            flat = jnp.pad(flat, (0, pad))
        x2 = flat.reshape(rows, cols)
        kern = functools.partial(_dropout_kernel, threshold=threshold, scale=scale,
                                 cols_shift=cols.bit_length() - 1)
        out2 = _run(kern, x2, seed)
        out_flat = out2.reshape(-1)
        if pad:
            out_flat = out_flat[:L]
        return out_flat.reshape(x.shape)


# ---------------------------------------------------------------------- main --

if __name__ == "__main__":
    key = jax.random.PRNGKey(0)
    k1, k2 = jax.random.split(key)

    p = 0.5

    # 4-D input -> dropout2d path (channel dropout).  Layout: NCHW
    x4 = jax.random.normal(k1, (2, 4, 16, 16), dtype=jnp.float32)
    y4 = jax.block_until_ready(bernoulli_dropout(x4, p=p, seed=1234))
    assert y4.shape == x4.shape and y4.dtype == x4.dtype
    # each (n, c) channel must be either all-zero or exactly x / (1 - p)
    ch = y4.reshape(8, -1)
    xch = x4.reshape(8, -1)
    for r in range(8):
        zero_row = bool(jnp.all(ch[r] == 0.0))
        scaled_row = bool(jnp.allclose(ch[r], xch[r] / (1.0 - p), rtol=1e-5, atol=1e-5))
        assert zero_row or scaled_row

    # 2-D input -> elementwise dropout path
    x2 = jax.random.normal(k2, (8, 128), dtype=jnp.float32)
    y2 = jax.block_until_ready(bernoulli_dropout(x2, p=p, seed=42))
    assert y2.shape == x2.shape and y2.dtype == x2.dtype
    kept = y2 != 0.0
    assert bool(jnp.allclose(jnp.where(kept, y2, 0.0),
                             jnp.where(kept, x2 / (1.0 - p), 0.0),
                             rtol=1e-5, atol=1e-5))

    print("KERNEL_OK")
</pallas_src>

<mosaic_0001>
module attributes {stable_mosaic.version = 11 : i64} {
  func.func @_dropout2d_kernel(%arg0: i32, %arg1: i32, %arg2: memref<1xi32, #tpu.memory_space<smem>>, %arg3: memref<8x256xf32, #tpu.memory_space<vmem>>, %arg4: memref<8x256xf32, #tpu.memory_space<vmem>>) attributes {dimension_semantics = [#tpu.dimension_semantics<parallel>, #tpu.dimension_semantics<parallel>], iteration_bounds = array<i64: 1, 1>, scalar_prefetch = 1 : i64, scratch_operands = 0 : i64, tpu.core_type = #tpu.core_type<tc>, window_params = [{transform_indices = @transform_0, window_bounds = array<i64: 8, 256>}, {transform_indices = @transform_1, window_bounds = array<i64: 8, 256>}]} {
    %0 = tpu.iota {dimensions = array<i32: 0>} : vector<8x256xi32>
    %c8_i32 = arith.constant 8 : i32
    %1 = arith.muli %arg0, %c8_i32 : i32
    %2 = vector.broadcast %1 : i32 to vector<8x256xi32>
    %3 = arith.addi %0, %2 : vector<8x256xi32>
    %c0 = arith.constant 0 : index
    %4 = memref.load %arg2[%c0] : memref<1xi32, #tpu.memory_space<smem>>
    %5 = vector.broadcast %4 : i32 to vector<8x256xi32>
    %6 = arith.xori %3, %5 : vector<8x256xi32>
    %c-1_i32 = arith.constant -1 : i32
    %7 = vector.broadcast %c-1_i32 : i32 to vector<8x256xi32>
    %8 = arith.xori %6, %7 : vector<8x256xi32>
    %c15_i32 = arith.constant 15 : i32
    %9 = vector.broadcast %c15_i32 : i32 to vector<8x256xi32>
    %10 = arith.shli %6, %9 : vector<8x256xi32>
    %11 = arith.addi %8, %10 : vector<8x256xi32>
    %c12_i32 = arith.constant 12 : i32
    %12 = vector.broadcast %c12_i32 : i32 to vector<8x256xi32>
    %13 = arith.shrsi %11, %12 : vector<8x256xi32>
    %14 = arith.xori %11, %13 : vector<8x256xi32>
    %c2_i32 = arith.constant 2 : i32
    %15 = vector.broadcast %c2_i32 : i32 to vector<8x256xi32>
    %16 = arith.shli %14, %15 : vector<8x256xi32>
    %17 = arith.addi %14, %16 : vector<8x256xi32>
    %c4_i32 = arith.constant 4 : i32
    %18 = vector.broadcast %c4_i32 : i32 to vector<8x256xi32>
    %19 = arith.shrsi %17, %18 : vector<8x256xi32>
    %20 = arith.xori %17, %19 : vector<8x256xi32>
    %c3_i32 = arith.constant 3 : i32
    %21 = vector.broadcast %c3_i32 : i32 to vector<8x256xi32>
    %22 = arith.shli %20, %21 : vector<8x256xi32>
    %23 = arith.addi %20, %22 : vector<8x256xi32>
    %c11_i32 = arith.constant 11 : i32
    %24 = vector.broadcast %c11_i32 : i32 to vector<8x256xi32>
    %25 = arith.shli %20, %24 : vector<8x256xi32>
    %26 = arith.addi %23, %25 : vector<8x256xi32>
    %c16_i32 = arith.constant 16 : i32
    %27 = vector.broadcast %c16_i32 : i32 to vector<8x256xi32>
    %28 = arith.shrsi %26, %27 : vector<8x256xi32>
    %29 = arith.xori %26, %28 : vector<8x256xi32>
    %c16777215_i32 = arith.constant 16777215 : i32
    %30 = vector.broadcast %c16777215_i32 : i32 to vector<8x256xi32>
    %31 = arith.andi %29, %30 : vector<8x256xi32>
    %c8388608_i32 = arith.constant 8388608 : i32
    %32 = vector.broadcast %c8388608_i32 : i32 to vector<8x256xi32>
    %33 = arith.cmpi sge, %31, %32 : vector<8x256xi32>
    %c0_0 = arith.constant 0 : index
    %c0_1 = arith.constant 0 : index
    %34 = vector.load %arg3[%c0_0, %c0_1] : memref<8x256xf32, #tpu.memory_space<vmem>>, vector<8x256xf32>
    %cst = arith.constant 2.000000e+00 : f32
    %35 = vector.broadcast %cst : f32 to vector<8x256xf32>
    %36 = arith.mulf %34, %35 : vector<8x256xf32>
    %c0_i32 = arith.constant 0 : i32
    %37 = arith.sitofp %c0_i32 : i32 to f32
    %38 = vector.broadcast %37 : f32 to vector<8x256xf32>
    %39 = arith.select %33, %36, %38 : vector<8x256xi1>, vector<8x256xf32>
    %c0_2 = arith.constant 0 : index
    %c0_3 = arith.constant 0 : index
    %40 = vector.load %arg4[%c0_2, %c0_3] : memref<8x256xf32, #tpu.memory_space<vmem>>, vector<8x256xf32>
    tpu.vector_store %arg4[%c0_2, %c0_3], %39 {strides = array<i32>} : memref<8x256xf32, #tpu.memory_space<vmem>>, vector<8x256xf32>,
    return
  }
  func.func @transform_0(%arg0: i32, %arg1: i32, %arg2: memref<1xi32, #tpu.memory_space<smem>>) -> (i32, i32) {
    %c0_i32 = arith.constant 0 : i32
    return %arg0, %arg1 : i32, i32
  }
  func.func @transform_1(%arg0: i32, %arg1: i32, %arg2: memref<1xi32, #tpu.memory_space<smem>>) -> (i32, i32) {
    %c0_i32 = arith.constant 0 : i32
    return %arg0, %arg1 : i32, i32
  }
}

</mosaic_0001>

<llo_original>
// kernel: tpu_custom_call.1
$region0: #{tpu_custom_call.1}
  #allocation0 [shape = 'u32[]', space=smem, size = 0x4, offset = 0x4, fixed_abs, tag = 'smem constant byte address 0x4 - core index']
  #allocation1 [shape = 'u32[144,128]{1,0:T(1,128)}', space=vmem, size = 0x12000, scoped, tag = 'internal scratch']
  #allocation2 [shape = 's32[1]{0}', space=sflag, size = 0x4, scoped, tag = 'scoped memory for tpu_custom_call.1']
  #allocation3 [shape = 's32[1]{0:T(128)S(6)}', space=smem, size = 0x200, scoped, tag = 'prefetched SMEM operand 0']
  %s0 = inlined_call_operand.<no memory space> [shape: s32[1], index: 0, kind: input, shape index: {}]
  %s1 = inlined_call_operand.hbm [shape: f32[8,256], index: 1, kind: input, shape index: {}]
  %s2 = inlined_call_operand.hbm [shape: f32[8,256], index: 2, kind: output, shape index: {}]
  %s3 = sld [smem:[#allocation0]]
  $region18: #{tpu_custom_call.1} parent=0
    _
  %s5 = ssub.s32 1, %s3
  %s6 = scalar_select 0, %s5, %s3
  %7 = sst [smem:[#allocation3]] %s0
  $region1: #{tpu_custom_call.1} parent=0
    #allocation4 [shape = 'u8[8192]{0}', space=vmem, size = 0x2000, scoped, tag = 'input window, operand 1, single buffered']
    #allocation5 [shape = 's32[1]{0}', space=sflag, size = 0x4, scoped, tag = 'scoped memory for tpu_custom_call.1']
    #allocation6 [shape = 's32[1]{0}', space=sflag, size = 0x4, scoped, tag = 'scoped memory for tpu_custom_call.1']
    #allocation7 [shape = 'u8[8192]{0}', space=vmem, size = 0x2000, scoped, tag = 'output window, operand 0, single buffered']
    %8 = vsyncpa [#allocation5], 0
    %9 = vsyncpa [#allocation6], 0
    // Predicated region
    $region2: #{tpu_custom_call.1} parent=1 // pred_check
      _
    $region3: #{tpu_custom_call.1} parent=1 // pred_check_branch
      %11 = sbr.rel (0) target = $region5
    $region4: #{tpu_custom_call.1} parent=1 // pred_region
      %s13 = ssub.s32 256, 256
      %14 = vsyncadd [#allocation5], %s13
      %s16 = sshll.u32 [#allocation4], 4
      %s17 = int_to_ptr.vmem [resolvable:$true] %s16
      %19 = dma.hbm_to_vmem [thread:$0]  %s1, 256, %s17, [#allocation5]
    $region5: #{tpu_custom_call.1} parent=1 // pred_fallthru
      _
    // Predicated region
    $region6: #{tpu_custom_call.1} parent=1 // pred_check
      _
    $region7: #{tpu_custom_call.1} parent=1 // pred_check_branch
      %21 = sbr.rel (0) target = $region9
    $region8: #{tpu_custom_call.1} parent=1 // pred_region
      %22 = dma.done [#allocation5], 256
    $region9: #{tpu_custom_call.1} parent=1 // pred_fallthru
      _
    %v23 = vlaneseq
    %v24 = vshrl.u32 %v23, 7
    %s25 = smul.u32 0, 8
    %v26 = vstv %s25
    %v27 = vadd.s32 %v24, %v26
    %s28 = sld [smem:[#allocation3]]
    %v29 = vstv %s28
    %v30 = vxor.u32 %v27, %v29
    %v31 = vxor.u32 %v30, 4294967295
    %v32 = vshll.u32 %v30, 15
    %v33 = vadd.s32 %v31, %v32
    %v34 = vshra.s32 %v33, 12
    %v35 = vxor.u32 %v33, %v34
    %v36 = vshll.u32 %v35, 2
    %v37 = vadd.s32 %v35, %v36
    %v38 = vshra.s32 %v37, 4
    %v39 = vxor.u32 %v37, %v38
    %v40 = vshll.u32 %v39, 3
    %v41 = vadd.s32 %v39, %v40
    %v42 = vshll.u32 %v39, 11
    %v43 = vadd.s32 %v41, %v42
    %v44 = vshra.s32 %v43, 16
    %v45 = vxor.u32 %v43, %v44
    %v46 = vand.u32 %v45, 16777215
    %vm47 = vcmp.ge.s32.totalorder %v46, 8388608
    %v48 = vld [vmem:[#allocation4] sm:$0xff]
    %v49 = vld [vmem:[#allocation4 + $0x8] sm:$0xff]
    %v50 = vmul.f32 %v48, 2.0
    %v51 = vmul.f32 %v49, 2.0
    %v52 = vsel %vm47, %v50, 0.0
    %v53 = vsel %vm47, %v51, 0.0
    %54 = vst [vmem:[#allocation7] sm:$0xff] %v52
    %55 = vst [vmem:[#allocation7 + $0x8] sm:$0xff] %v53
    // Predicated region
    $region10: #{tpu_custom_call.1} parent=1 // pred_check
      _
    $region11: #{tpu_custom_call.1} parent=1 // pred_check_branch
      %57 = sbr.rel (0) target = $region13
    $region12: #{tpu_custom_call.1} parent=1 // pred_region
      %s59 = ssub.s32 256, 256
      %60 = vsyncadd [#allocation6], %s59
      %s62 = sshll.u32 [#allocation7], 4
      %s63 = int_to_ptr.vmem [resolvable:$true] %s62
      %65 = dma.vmem_to_hbm [thread:$0]  %s63, 256, %s2, [#allocation6]
    $region13: #{tpu_custom_call.1} parent=1 // pred_fallthru
      _
    // Predicated region
    $region14: #{tpu_custom_call.1} parent=1 // pred_check
      _
    $region15: #{tpu_custom_call.1} parent=1 // pred_check_branch
      %67 = sbr.rel (0) target = $region17
    $region16: #{tpu_custom_call.1} parent=1 // pred_region
      %68 = dma.done [#allocation6], 256
    $region17: #{tpu_custom_call.1} parent=1 // pred_fallthru
      _
    %69 = vsyncpa [#allocation5], 1
    %70 = vsyncpa [#allocation6], 1

</llo_original>
